<compile_context>
chip_gen: v5e
topology: v5e:2x2
jax: 0.10.0
libtpu: 0.0.40
codegen_flags: <defaults>
</compile_context>

<pallas_src>
import functools
import math

import jax
import jax.numpy as jnp
from jax.experimental import pallas as pl
from jax.experimental.pallas import tpu as pltpu


def _lcm(a, b):
    return a * b // math.gcd(a, b)


def _group_norm_kernel(*refs, eps, inv_n, subtractive, divisive, affine):
    if affine:
        x_ref, w_ref, b_ref, o_ref = refs
    else:
        x_ref, o_ref = refs
        w_ref = b_ref = None

    x = x_ref[...].astype(jnp.float32)

    # Two-pass stats per row (= per (sample, group)).  Both passes run on the
    # VMEM-resident f32 block, so this costs no HBM traffic; the extra
    # VPU/XLU work is free filler in an HBM-bound kernel and avoids the
    # E[x^2] - mean^2 cancellation problem.
    mean = jnp.sum(x, axis=-1, keepdims=True) * inv_n
    centered = x - mean
    var = jnp.sum(centered * centered, axis=-1, keepdims=True) * inv_n
    inv_std = jax.lax.rsqrt(var + eps)

    if subtractive and not divisive:
        y = centered
    elif divisive and not subtractive:
        y = x * inv_std
    else:
        y = centered * inv_std

    if affine:
        # Params arrive as a small (p_rows, L) slab (row j <-> group j % G);
        # replicate to the rt-row tile here instead of streaming rt*L params
        # from HBM every call.
        reps = x_ref.shape[0] // w_ref.shape[0]
        w = w_ref[...].astype(jnp.float32)
        b = b_ref[...].astype(jnp.float32)
        if reps > 1:
            w = jnp.tile(w, (reps, 1))
            b = jnp.tile(b, (reps, 1))
        y = y * w + b

    o_ref[...] = y.astype(o_ref.dtype)


def _pick_row_tile(num_rows, group, sublane, row_bytes,
                   target_bytes=4 * 1024 * 1024):
    """Choose rows per grid step.

    rt is a multiple of lcm(group, sublane) (so the per-group affine pattern
    and packed-sublane layout stay aligned) unless it covers all rows (block
    dim == array dim, exempt from the (8,128) rule).  The tile does NOT have
    to divide num_rows: the grid uses cdiv and a partial trailing block.
    Prefers an even (>=2) number of grid steps for v7x megacore balance.
    """
    step = _lcm(group, sublane)
    if num_rows <= step:
        return num_rows

    rows_budget = max(1, target_bytes // max(1, row_bytes))
    rt = (min(rows_budget, num_rows) // step) * step
    rt = max(rt, step)

    n_steps = -(-num_rows // rt)
    if n_steps % 2 == 1:
        # Try to land on an even step count without shrinking below `step`.
        even_steps = n_steps + 1
        rt_even = -(-num_rows // even_steps)
        rt_even = -(-rt_even // step) * step
        if rt_even >= step and -(-num_rows // rt_even) == even_steps:
            rt = rt_even
    return rt


def custom_group_norm(x, weight=None, bias=None, *, num_groups, eps=1e-5,
                      subtractive=False, divisive=False, affine=True):
    """Forward pass of CustomGroupNorm.

    x:      (B, C, H, W) float array (NCHW, same as the PyTorch module)
    weight: (1, C, 1, 1) affine scale (required if affine=True)
    bias:   (1, C, 1, 1) affine shift (required if affine=True)
    """
    B, C, H, W = x.shape
    G = int(num_groups)
    if C % G != 0:
        raise ValueError(f"num_channels={C} is not divisible by num_groups={G}")
    Cg = C // G
    HW = H * W
    R = B * G          # one row per (sample, group)
    L = Cg * HW        # lane axis: channels-within-group x spatial

    use_affine = bool(affine)
    if use_affine:
        if weight is None or bias is None:
            raise ValueError("affine=True requires weight and bias")
        # torch.nn.GroupNorm channel ordering: groups are contiguous channel
        # blocks; enforce the (1, C, 1, 1) parameter layout explicitly.
        if tuple(weight.shape) != (1, C, 1, 1) or tuple(bias.shape) != (1, C, 1, 1):
            raise ValueError("weight/bias must have shape (1, C, 1, 1)")

    x2 = x.reshape(R, L)

    itemsize = jnp.dtype(x.dtype).itemsize
    # Dtype-aware sublane multiple: f32 -> 8, bf16 -> 16, int8/fp8 -> 32
    # (sub-32-bit rows pack along sublanes; keep packed sublanes full).
    sublane = 8 * max(1, 4 // itemsize)
    rt = _pick_row_tile(R, G, sublane, L * itemsize)
    grid = (pl.cdiv(R, rt),)

    operands = [x2]
    in_specs = [pl.BlockSpec((rt, L), lambda r: (r, 0))]

    p_rows = 0
    if use_affine:
        # Expand per-channel params ONCE to small per-group lane vectors, in
        # x.dtype, padded to a sublane-aligned row count (row j of every tile
        # is group j % G since rt is a multiple of G).  Constant block index
        # -> fetched into VMEM once, never re-DMA'd; HBM footprint is a few KiB.
        p_rows = min(rt, _lcm(G, sublane))
        assert rt % p_rows == 0 and p_rows % G == 0
        w_gl = jnp.broadcast_to(
            weight.reshape(G, Cg, 1), (G, Cg, HW)).reshape(G, L)
        b_gl = jnp.broadcast_to(
            bias.reshape(G, Cg, 1), (G, Cg, HW)).reshape(G, L)
        w_p = jnp.tile(w_gl, (p_rows // G, 1)).astype(x.dtype)
        b_p = jnp.tile(b_gl, (p_rows // G, 1)).astype(x.dtype)
        operands += [w_p, b_p]
        in_specs += [pl.BlockSpec((p_rows, L), lambda r: (0, 0)),
                     pl.BlockSpec((p_rows, L), lambda r: (0, 0))]
        # Note: the param blocks are tiny now, so leaving them at the default
        # double-buffering costs only a few KiB of VMEM (pl.Buffered(1) would
        # save a negligible amount and isn't worth the lowering risk).

    kernel = functools.partial(
        _group_norm_kernel,
        eps=float(eps),
        inv_n=1.0 / float(L),
        subtractive=bool(subtractive),
        divisive=bool(divisive),
        affine=use_affine,
    )

    # VMEM budget: x + out double-buffered, f32 working copies (x, centered/y,
    # replicated params), plus the (tiny) double-buffered param blocks.
    block_bytes = rt * L * itemsize
    f32_block = rt * L * 4
    param_bytes = 2 * 2 * p_rows * L * itemsize if use_affine else 0
    vmem_est = 4 * block_bytes + 3 * f32_block + param_bytes

    # Generation-aware cap: ~75% of physical VMEM (~48 MiB on v7x's 64 MiB,
    # ~96 MiB on v5e/v6e's 128 MiB) so the compiler keeps scratch headroom.
    try:
        phys_vmem = int(pltpu.get_tpu_info().vmem_capacity_bytes)
    except Exception:
        phys_vmem = 64 * 1024 * 1024   # conservative (v7x) fallback
    cap = (phys_vmem * 3) // 4
    vmem_limit = int(min(cap, max(32 * 1024 * 1024, int(vmem_est * 1.25))))
    # TODO(synk): for extremely large per-group sizes (Cg*H*W of tens of MiB
    # per row) a two-pass tiled-reduction path (stats kernel + normalize
    # kernel) would be needed to fit VMEM; not required at these shapes.

    out = pl.pallas_call(
        kernel,
        out_shape=jax.ShapeDtypeStruct((R, L), x.dtype),
        grid_spec=pltpu.PrefetchScalarGridSpec(
            num_scalar_prefetch=0,
            grid=grid,
            in_specs=in_specs,
            out_specs=pl.BlockSpec((rt, L), lambda r: (r, 0)),
        ),
        compiler_params=pltpu.CompilerParams(
            dimension_semantics=("parallel",),
            vmem_limit_bytes=vmem_limit,
        ),
    )(*operands)

    return out.reshape(B, C, H, W)


def _reference_group_norm(x, weight, bias, *, num_groups, eps, subtractive,
                          divisive, affine):
    B, C, H, W = x.shape
    G = num_groups
    xr = x.reshape(B, G, C // G, H, W).astype(jnp.float32)
    mean = jnp.mean(xr, axis=(2, 3, 4), keepdims=True)
    var = jnp.mean((xr - mean) ** 2, axis=(2, 3, 4), keepdims=True)
    if subtractive and not divisive:
        y = xr - mean
    elif divisive and not subtractive:
        y = xr / jnp.sqrt(var + eps)
    else:
        y = (xr - mean) / jnp.sqrt(var + eps)
    y = y.reshape(B, C, H, W)
    if affine:
        y = y * weight + bias
    return y.astype(x.dtype)


def _run_case(key, B, C, H, W, G, configs, eps=1e-5):
    kx, kw, kb = jax.random.split(key, 3)
    x = jax.random.normal(kx, (B, C, H, W), dtype=jnp.float32)
    weight = 1.0 + 0.1 * jax.random.normal(kw, (1, C, 1, 1), dtype=jnp.float32)
    bias = 0.1 * jax.random.normal(kb, (1, C, 1, 1), dtype=jnp.float32)
    for sub, div, aff in configs:
        out = custom_group_norm(
            x, weight if aff else None, bias if aff else None,
            num_groups=G, eps=eps, subtractive=sub, divisive=div, affine=aff)
        out = jax.block_until_ready(out)
        ref = _reference_group_norm(
            x, weight, bias, num_groups=G, eps=eps,
            subtractive=sub, divisive=div, affine=aff)
        assert out.shape == (B, C, H, W)
        assert jnp.allclose(out, ref, atol=1e-4, rtol=1e-5), (
            (B, C, H, W, G, sub, div, aff),
            float(jnp.max(jnp.abs(out - ref))))


if __name__ == "__main__":
    key = jax.random.PRNGKey(0)
    k0, k1, k2 = jax.random.split(key, 3)

    # Primary small shape (module-consistent), exercising every branch.
    _run_case(k0, 2, 4, 16, 16, 2, configs=[
        (False, False, True),   # full group norm + affine (module default)
        (True, False, True),    # subtractive-only
        (False, True, True),    # divisive-only
        (False, False, False),  # no affine
    ])
    # Multi-step grid + in-kernel param replication (R=64 rows, 2 grid steps).
    _run_case(k1, 16, 8, 8, 8, 4, configs=[(False, False, True)])
    # Non-divisible row count -> partial trailing block (R=20, rt=16).
    _run_case(k2, 5, 8, 8, 8, 4, configs=[(False, False, True),
                                          (False, False, False)])

    print("KERNEL_OK")
</pallas_src>

<mosaic_0001>
module attributes {stable_mosaic.version = 11 : i64} {
  func.func @_group_norm_kernel(%arg0: i32, %arg1: memref<4x512xf32, #tpu.memory_space<vmem>>, %arg2: memref<4x512xf32, #tpu.memory_space<vmem>>, %arg3: memref<4x512xf32, #tpu.memory_space<vmem>>, %arg4: memref<4x512xf32, #tpu.memory_space<vmem>>) attributes {dimension_semantics = [#tpu.dimension_semantics<parallel>], iteration_bounds = array<i64: 1>, scalar_prefetch = 0 : i64, scratch_operands = 0 : i64, tpu.core_type = #tpu.core_type<tc>, window_params = [{transform_indices = @transform_0, window_bounds = array<i64: 4, 512>}, {pipeline_mode = #tpu.pipeline_mode<synchronous>, transform_indices = @transform_1, window_bounds = array<i64: 4, 512>}, {pipeline_mode = #tpu.pipeline_mode<synchronous>, transform_indices = @transform_2, window_bounds = array<i64: 4, 512>}, {transform_indices = @transform_3, window_bounds = array<i64: 4, 512>}]} {
    %c0 = arith.constant 0 : index
    %c0_0 = arith.constant 0 : index
    %0 = vector.load %arg1[%c0, %c0_0] : memref<4x512xf32, #tpu.memory_space<vmem>>, vector<4x512xf32>
    %cst = arith.constant dense<0.000000e+00> : vector<4xf32>
    %1 = vector.multi_reduction <add>, %0, %cst [1] : vector<4x512xf32> to vector<4xf32>
    %2 = vector.shape_cast %1 : vector<4xf32> to vector<4x1xf32>
    %cst_1 = arith.constant 0.001953125 : f32
    %3 = vector.broadcast %cst_1 : f32 to vector<4x1xf32>
    %4 = arith.mulf %2, %3 : vector<4x1xf32>
    %5 = vector.broadcast %4 : vector<4x1xf32> to vector<4x512xf32>
    %6 = arith.subf %0, %5 : vector<4x512xf32>
    %7 = arith.mulf %6, %6 : vector<4x512xf32>
    %cst_2 = arith.constant dense<0.000000e+00> : vector<4xf32>
    %8 = vector.multi_reduction <add>, %7, %cst_2 [1] : vector<4x512xf32> to vector<4xf32>
    %9 = vector.shape_cast %8 : vector<4xf32> to vector<4x1xf32>
    %cst_3 = arith.constant 0.001953125 : f32
    %10 = vector.broadcast %cst_3 : f32 to vector<4x1xf32>
    %11 = arith.mulf %9, %10 : vector<4x1xf32>
    %cst_4 = arith.constant 9.99999974E-6 : f32
    %12 = vector.broadcast %cst_4 : f32 to vector<4x1xf32>
    %13 = arith.addf %11, %12 : vector<4x1xf32>
    %14 = math.rsqrt %13 : vector<4x1xf32>
    %15 = vector.broadcast %14 : vector<4x1xf32> to vector<4x512xf32>
    %16 = arith.mulf %6, %15 : vector<4x512xf32>
    %c0_5 = arith.constant 0 : index
    %c0_6 = arith.constant 0 : index
    %17 = vector.load %arg2[%c0_5, %c0_6] : memref<4x512xf32, #tpu.memory_space<vmem>>, vector<4x512xf32>
    %c0_7 = arith.constant 0 : index
    %c0_8 = arith.constant 0 : index
    %18 = vector.load %arg3[%c0_7, %c0_8] : memref<4x512xf32, #tpu.memory_space<vmem>>, vector<4x512xf32>
    %19 = arith.mulf %16, %17 : vector<4x512xf32>
    %20 = arith.addf %19, %18 : vector<4x512xf32>
    %c0_9 = arith.constant 0 : index
    %c0_10 = arith.constant 0 : index
    %21 = vector.load %arg4[%c0_9, %c0_10] : memref<4x512xf32, #tpu.memory_space<vmem>>, vector<4x512xf32>
    tpu.vector_store %arg4[%c0_9, %c0_10], %20 {strides = array<i32>} : memref<4x512xf32, #tpu.memory_space<vmem>>, vector<4x512xf32>,
    return
  }
  func.func @transform_0(%arg0: i32) -> (i32, i32) {
    %c0_i32 = arith.constant 0 : i32
    %c0_i32_0 = arith.constant 0 : i32
    return %arg0, %c0_i32 : i32, i32
  }
  func.func @transform_1(%arg0: i32) -> (i32, i32) {
    %c0_i32 = arith.constant 0 : i32
    %c0_i32_0 = arith.constant 0 : i32
    %c0_i32_1 = arith.constant 0 : i32
    return %c0_i32, %c0_i32_0 : i32, i32
  }
  func.func @transform_2(%arg0: i32) -> (i32, i32) {
    %c0_i32 = arith.constant 0 : i32
    %c0_i32_0 = arith.constant 0 : i32
    %c0_i32_1 = arith.constant 0 : i32
    return %c0_i32, %c0_i32_0 : i32, i32
  }
  func.func @transform_3(%arg0: i32) -> (i32, i32) {
    %c0_i32 = arith.constant 0 : i32
    %c0_i32_0 = arith.constant 0 : i32
    return %arg0, %c0_i32 : i32, i32
  }
}

</mosaic_0001>

<llo_original>
// kernel: tpu_custom_call.1
$region0: #{tpu_custom_call.1}
  #allocation0 [shape = 'u32[]', space=smem, size = 0x4, offset = 0x4, fixed_abs, tag = 'smem constant byte address 0x4 - core index']
  #allocation1 [shape = 'u32[72,128]{1,0:T(1,128)}', space=vmem, size = 0x9000, scoped, tag = 'internal scratch']
  %s0 = inlined_call_operand.hbm [shape: f32[4,512], index: 0, kind: input, shape index: {}]
  %s1 = inlined_call_operand.hbm [shape: f32[4,512], index: 1, kind: input, shape index: {}]
  %s2 = inlined_call_operand.hbm [shape: f32[4,512], index: 2, kind: input, shape index: {}]
  %s3 = inlined_call_operand.hbm [shape: f32[4,512], index: 3, kind: output, shape index: {}]
  %s4 = sld [smem:[#allocation0]]
  $region34: #{tpu_custom_call.1} parent=0
    _
  %s6 = ssub.s32 1, %s4
  %s7 = scalar_select 0, %s6, %s4
  $region1: #{tpu_custom_call.1} parent=0
    #allocation2 [shape = 'u8[8192]{0}', space=vmem, size = 0x2000, scoped, tag = 'input window, operand 0, single buffered']
    #allocation3 [shape = 's32[1]{0}', space=sflag, size = 0x4, scoped, tag = 'scoped memory for tpu_custom_call.1']
    #allocation4 [shape = 's32[1]{0}', space=sflag, size = 0x4, scoped, tag = 'scoped memory for tpu_custom_call.1']
    #allocation5 [shape = 'u8[8192]{0}', space=vmem, size = 0x2000, scoped, tag = 'input window, operand 1, single buffered']
    #allocation6 [shape = 's32[1]{0}', space=sflag, size = 0x4, scoped, tag = 'scoped memory for tpu_custom_call.1']
    #allocation7 [shape = 'u8[8192]{0}', space=vmem, size = 0x2000, scoped, tag = 'input window, operand 2, single buffered']
    #allocation8 [shape = 'u8[8192]{0}', space=vmem, size = 0x2000, scoped, tag = 'output window, operand 0, single buffered']
    %8 = vsyncpa [#allocation3], 0
    %9 = vsyncpa [#allocation6], 0
    %10 = vsyncpa [#allocation4], 0
    // Predicated region
    $region2: #{tpu_custom_call.1} parent=1 // pred_check
      _
    $region3: #{tpu_custom_call.1} parent=1 // pred_check_branch
      %12 = sbr.rel (0) target = $region5
    $region4: #{tpu_custom_call.1} parent=1 // pred_region
      %14 = vsyncadd [#allocation3], 0
      %s16 = sshll.u32 %s0, 4
      %s17 = int_to_ptr.hbm [resolvable:$true] %s16
      %s18 = sshll.u32 [#allocation2], 4
      %s19 = int_to_ptr.vmem [resolvable:$true] %s18
      %21 = dma.hbm_to_vmem [thread:$0]  %s17, 256, %s19, [#allocation3]
    $region5: #{tpu_custom_call.1} parent=1 // pred_fallthru
      _
    // Predicated region
    $region6: #{tpu_custom_call.1} parent=1 // pred_check
      _
    $region7: #{tpu_custom_call.1} parent=1 // pred_check_branch
      %23 = sbr.rel (0) target = $region9
    $region8: #{tpu_custom_call.1} parent=1 // pred_region
      %25 = vsyncadd [#allocation6], 0
      %s27 = sshll.u32 %s1, 4
      %s28 = int_to_ptr.hbm [resolvable:$true] %s27
      %s29 = sshll.u32 [#allocation5], 4
      %s30 = int_to_ptr.vmem [resolvable:$true] %s29
      %32 = dma.hbm_to_vmem [thread:$0]  %s28, 256, %s30, [#allocation6]
    $region9: #{tpu_custom_call.1} parent=1 // pred_fallthru
      _
    // Predicated region
    $region10: #{tpu_custom_call.1} parent=1 // pred_check
      _
    $region11: #{tpu_custom_call.1} parent=1 // pred_check_branch
      %34 = sbr.rel (0) target = $region13
    $region12: #{tpu_custom_call.1} parent=1 // pred_region
      %36 = vsyncadd [#allocation6], 0
      %s38 = sshll.u32 %s2, 4
      %s39 = int_to_ptr.hbm [resolvable:$true] %s38
      %s40 = sshll.u32 [#allocation7], 4
      %s41 = int_to_ptr.vmem [resolvable:$true] %s40
      %43 = dma.hbm_to_vmem [thread:$0]  %s39, 256, %s41, [#allocation6]
    $region13: #{tpu_custom_call.1} parent=1 // pred_fallthru
      _
    // Predicated region
    $region14: #{tpu_custom_call.1} parent=1 // pred_check
      _
    $region15: #{tpu_custom_call.1} parent=1 // pred_check_branch
      %45 = sbr.rel (0) target = $region17
    $region16: #{tpu_custom_call.1} parent=1 // pred_region
      %47 = dma.done [#allocation3], 256
    $region17: #{tpu_custom_call.1} parent=1 // pred_fallthru
      _
    // Predicated region
    $region18: #{tpu_custom_call.1} parent=1 // pred_check
      _
    $region19: #{tpu_custom_call.1} parent=1 // pred_check_branch
      %49 = sbr.rel (0) target = $region21
    $region20: #{tpu_custom_call.1} parent=1 // pred_region
      %51 = dma.done [#allocation6], 256
    $region21: #{tpu_custom_call.1} parent=1 // pred_fallthru
      _
    // Predicated region
    $region22: #{tpu_custom_call.1} parent=1 // pred_check
      _
    $region23: #{tpu_custom_call.1} parent=1 // pred_check_branch
      %53 = sbr.rel (0) target = $region25
    $region24: #{tpu_custom_call.1} parent=1 // pred_region
      %55 = dma.done [#allocation6], 256
    $region25: #{tpu_custom_call.1} parent=1 // pred_fallthru
      _
    %v56 = vld [vmem:[#allocation2] sm:$0xff]
    %v57 = vld [vmem:[#allocation2 + $0x8] sm:$0xff]
    %60 = vst [vmem:[#allocation1] ss:$2 sm:$0xff] %v56
    %s61 = scalar_lea.vmem [#allocation1], 16
    %62 = vst [vmem:[%s61] ss:$2 sm:$0xff] %v57
    %v63 = vld.sshfl [vmem:[#allocation1] sm:$0xff pattern:$0x75316420]
    %v64 = vld.sshfl [vmem:[#allocation1 + $0x8] sm:$0xff pattern:$0x75316420]
    %v65 = vld.sshfl [vmem:[#allocation1 + $0x10] sm:$0xff pattern:$0x75316420]
    %v66 = vld.sshfl [vmem:[#allocation1 + $0x18] sm:$0xff pattern:$0x75316420]
    %vm71 = vcmask 1043456
    %v72 = vsel %vm71, %v63, 0.0
    %v73 = vsel %vm71, %v64, 0.0
    %v74 = vadd.f32 %v72, %v73
    %v75 = vsel %vm71, %v65, 0.0
    %v76 = vadd.f32 %v74, %v75
    %v77 = vsel %vm71, %v66, 0.0
    %v78 = vadd.f32 %v76, %v77
    %79 = vadd.xlane.f32.xlu0 %v78
    %v80 = vpop.xlane.xlu0 %79
    %v81 = vmul.f32 %v80, 0.001953125
    %v84 = vunpack.c.l.s4 839922192
    %v85 = vunpack.c.0.s8 %v84
    %v86 = vperm.slane %v81, %v85
    %v88 = vsub.f32 %v56, %v86
    %v89 = vsub.f32 %v57, %v86
    %v90 = vmul.f32 %v88, %v88
    %v91 = vmul.f32 %v89, %v89
    %94 = vst [vmem:[#allocation1] ss:$2 sm:$0xff] %v90
    %s95 = scalar_lea.vmem [#allocation1], 16
    %96 = vst [vmem:[%s95] ss:$2 sm:$0xff] %v91
    %v97 = vld.sshfl [vmem:[#allocation1] sm:$0xff pattern:$0x75316420]
    %v98 = vld.sshfl [vmem:[#allocation1 + $0x8] sm:$0xff pattern:$0x75316420]
    %v99 = vld.sshfl [vmem:[#allocation1 + $0x10] sm:$0xff pattern:$0x75316420]
    %v100 = vld.sshfl [vmem:[#allocation1 + $0x18] sm:$0xff pattern:$0x75316420]
    %v105 = vsel %vm71, %v97, 0.0
    %v106 = vsel %vm71, %v98, 0.0
    %v107 = vadd.f32 %v105, %v106
    %v108 = vsel %vm71, %v99, 0.0
    %v109 = vadd.f32 %v107, %v108
    %v110 = vsel %vm71, %v100, 0.0
    %v111 = vadd.f32 %v109, %v110
    %112 = vadd.xlane.f32.xlu0 %v111
    %v113 = vpop.xlane.xlu0 %112
    %v114 = vmul.f32 %v113, 0.001953125
    %v115 = vadd.f32 %v114, 1e-05
    %v116 = vrsqrt.pop %v115
    %v117 = vmul.f32 %v116, %v115
    %v118 = vmul.f32 %v117, %v116
    %v119 = vmul.f32 0.5, %v118
    %v120 = vsub.f32 1.5, %v119
    %v121 = vmul.f32 %v116, %v120
    %vm122 = vweird.f32 %v115
    %vm123 = vweird.f32 %v116
    %vm124 = vmor %vm122, %vm123
    %v125 = vsel %vm124, %v116, %v121
    %v128 = vunpack.c.l.s4 839922192
    %v129 = vunpack.c.0.s8 %v128
    %v130 = vperm.slane %v125, %v129
    %v132 = vmul.f32 %v88, %v130
    %v133 = vmul.f32 %v89, %v130
    %v134 = vld [vmem:[#allocation5] sm:$0xff]
    %v135 = vld [vmem:[#allocation5 + $0x8] sm:$0xff]
    %v136 = vld [vmem:[#allocation7] sm:$0xff]
    %v137 = vld [vmem:[#allocation7 + $0x8] sm:$0xff]
    %v138 = vmul.f32 %v132, %v134
    %v139 = vmul.f32 %v133, %v135
    %v140 = vadd.f32 %v138, %v136
    %v141 = vadd.f32 %v139, %v137
    %142 = vst [vmem:[#allocation8] sm:$0xff] %v140
    %143 = vst [vmem:[#allocation8 + $0x8] sm:$0xff] %v141
    // Predicated region
    $region26: #{tpu_custom_call.1} parent=1 // pred_check
      _
    $region27: #{tpu_custom_call.1} parent=1 // pred_check_branch
      %145 = sbr.rel (0) target = $region29
    $region28: #{tpu_custom_call.1} parent=1 // pred_region
      %147 = vsyncadd [#allocation4], 0
      %s149 = sshll.u32 [#allocation8], 4
      %s150 = int_to_ptr.vmem [resolvable:$true] %s149
      %s151 = sshll.u32 %s3, 4
      %s152 = int_to_ptr.hbm [resolvable:$true] %s151
      %154 = dma.vmem_to_hbm [thread:$0]  %s150, 256, %s152, [#allocation4]
    $region29: #{tpu_custom_call.1} parent=1 // pred_fallthru
      _
    // Predicated region
    $region30: #{tpu_custom_call.1} parent=1 // pred_check
      _
    $region31: #{tpu_custom_call.1} parent=1 // pred_check_branch
      %156 = sbr.rel (0) target = $region33
    $region32: #{tpu_custom_call.1} parent=1 // pred_region
      %158 = dma.done [#allocation4], 256
    $region33: #{tpu_custom_call.1} parent=1 // pred_fallthru
      _
    %159 = vsyncpa [#allocation3], 1
    %160 = vsyncpa [#allocation6], 1
    %161 = vsyncpa [#allocation4], 1

</llo_original>
